<compile_context>
chip_gen: v5e
topology: v5e:2x2
jax: 0.10.0
libtpu: 0.0.40
codegen_flags: <defaults>
</compile_context>

<pallas_src>
import jax
import jax.numpy as jnp
from jax import lax
from jax.experimental import pallas as pl
from jax.experimental.pallas import tpu as pltpu


def _round_up(x, m):
    return (x + m - 1) // m * m


# ---------------------------------------------------------------------------
# Fused kernel: [im2col 3x3 conv of all heads] -> +bias -> ReLU -> [block-diag
# 1x1 conv of all heads] -> +bias.  One grid step per batch element.
# ---------------------------------------------------------------------------
def _fused_heads_kernel(p_ref, w1_ref, b1_ref, w2_ref, b2_ref, o_ref):
    # p_ref:  (1, H*W, 9*Cin)  im2col patches for one batch element
    # w1_ref: (9*Cin, HID)     BN-scaled, head-concatenated 3x3 weights (padded)
    # b1_ref: (1, HID)         folded conv-bias + BN shift (f32)
    # w2_ref: (HID, OUT)       block-diagonal 1x1 conv weights (padded)
    # b2_ref: (1, OUT)         1x1 conv biases (padded, f32)
    # o_ref:  (1, H*W, OUT)    lane-dense (OUT is a multiple of 128) f32 output
    acc = jnp.dot(p_ref[0], w1_ref[...], preferred_element_type=jnp.float32)
    h = jnp.maximum(acc + b1_ref[0], 0.0)
    out = jnp.dot(h.astype(w2_ref.dtype), w2_ref[...],
                  preferred_element_type=jnp.float32) + b2_ref[0]
    o_ref[0] = out.astype(o_ref.dtype)


# ---------------------------------------------------------------------------
# Parameter fusion (pure wrapper glue, done once at trace time).
# ---------------------------------------------------------------------------
def fuse_head_params(head_params, eps=1e-5, pad_to=128):
    """Fold eval-mode BN into the conv weights and fuse all heads into a single
    (im2col-matmul, block-diagonal-matmul) parameter set.

    head_params: list of (w1[3,3,Cin,C1], b1, gamma, beta, mean, var,
                          w2[C1,Cout], b2) per head.
    Returns (w1_mat[9*Cin,HID], b1_vec[HID], w2_mat[HID,OUT], b2_vec[OUT],
             offsets) where offsets[i] = (col_start, cout) of head i's outputs.
    """
    w1s, b1s, w2s, b2s, c1s, couts = [], [], [], [], [], []
    for (w1, b1, gamma, beta, mean, var, w2, b2) in head_params:
        scale = gamma / jnp.sqrt(var + eps)            # (C1,)
        w1s.append(w1 * scale)                         # BN scale folded into w1
        b1s.append((b1 - mean) * scale + beta)         # folded bias
        w2s.append(w2)
        b2s.append(b2)
        c1s.append(w1.shape[3])
        couts.append(w2.shape[1])

    cin = head_params[0][0].shape[2]
    hid, out = sum(c1s), sum(couts)
    HID, OUT = _round_up(hid, pad_to), _round_up(out, pad_to)

    w1_cat = jnp.concatenate(w1s, axis=3).reshape(9 * cin, hid)   # (288, 96)
    w1_mat = jnp.pad(w1_cat, ((0, 0), (0, HID - hid)))            # (288, 128)
    b1_vec = jnp.pad(jnp.concatenate(b1s), (0, HID - hid))        # (128,)

    w2_mat = jnp.zeros((HID, OUT), jnp.float32)                   # block diag
    b2_vec = jnp.zeros((OUT,), jnp.float32)
    offsets, r, c = [], 0, 0
    for w2, b2, c1, co in zip(w2s, b2s, c1s, couts):
        w2_mat = w2_mat.at[r:r + c1, c:c + co].set(w2)
        b2_vec = b2_vec.at[c:c + co].set(b2)
        offsets.append((c, co))
        r += c1
        c += co
    return w1_mat, b1_vec, w2_mat, b2_vec, offsets


def fused_heads_forward(x_nhwc, w1_mat, b1_vec, w2_mat, b2_vec,
                        compute_dtype=jnp.float32):
    """Run all fused heads.  Returns (N, H*W, OUT_padded) float32."""
    N, H, W, Cin = x_nhwc.shape
    K1, HID = w1_mat.shape
    OUT = w2_mat.shape[1]
    HWp = H * W

    # im2col in the wrapper: one K=9*Cin matmul in the kernel, no in-kernel
    # misaligned slice/reshape copies.  (N, H*W, 9*Cin)
    x_pad = jnp.pad(x_nhwc, ((0, 0), (1, 1), (1, 1), (0, 0)))
    patches = jnp.concatenate(
        [x_pad[:, ky:ky + H, kx:kx + W, :] for ky in range(3) for kx in range(3)],
        axis=-1).reshape(N, HWp, K1).astype(compute_dtype)

    itemsize = jnp.dtype(compute_dtype).itemsize
    flops = 2 * N * HWp * (K1 * HID + HID * OUT)
    bytes_accessed = (patches.size * itemsize
                      + (w1_mat.size + w2_mat.size) * itemsize
                      + (b1_vec.size + b2_vec.size) * 4
                      + N * HWp * OUT * 4)

    return pl.pallas_call(
        _fused_heads_kernel,
        out_shape=jax.ShapeDtypeStruct((N, HWp, OUT), jnp.float32),
        grid_spec=pltpu.PrefetchScalarGridSpec(
            num_scalar_prefetch=0,
            grid=(N,),
            in_specs=[
                pl.BlockSpec((1, HWp, K1), lambda n: (n, 0, 0)),
                pl.BlockSpec((K1, HID), lambda n: (0, 0)),
                pl.BlockSpec((1, HID), lambda n: (0, 0)),
                pl.BlockSpec((HID, OUT), lambda n: (0, 0)),
                pl.BlockSpec((1, OUT), lambda n: (0, 0)),
            ],
            out_specs=pl.BlockSpec((1, HWp, OUT), lambda n: (n, 0, 0)),
        ),
        compiler_params=pltpu.CompilerParams(
            dimension_semantics=("parallel",)),
        cost_estimate=pl.CostEstimate(
            flops=flops, transcendentals=0, bytes_accessed=bytes_accessed),
    )(patches,
      w1_mat.astype(compute_dtype),
      b1_vec.reshape(1, HID).astype(jnp.float32),
      w2_mat.astype(compute_dtype),
      b2_vec.reshape(1, OUT).astype(jnp.float32))


# ---------------------------------------------------------------------------
# Module-level forward (mirrors FaFMGDA.forward with only_det=True, binary=True)
# ---------------------------------------------------------------------------
def faf_mgda_forward(x_nchw, p_cls, p_reg, p_motion, *,
                     category_num, anchor_num, out_seq_len, box_code_size,
                     motion_state, compute_dtype=jnp.float32):
    x = jnp.transpose(x_nchw, (0, 2, 3, 1))                     # NCHW -> NHWC
    N, H, W, _ = x.shape

    heads = [p_cls, p_reg] + ([p_motion] if motion_state else [])
    w1_mat, b1_vec, w2_mat, b2_vec, offs = fuse_head_params(heads)
    out = fused_heads_forward(x, w1_mat, b1_vec, w2_mat, b2_vec,
                              compute_dtype=compute_dtype)       # (N, H*W, OUTp)

    c0, n0 = offs[0]
    c1, n1 = offs[1]
    cls_preds = out[:, :, c0:c0 + n0].reshape(N, -1, category_num)
    loc_preds = out[:, :, c1:c1 + n1].reshape(
        -1, H, W, anchor_num, out_seq_len, box_code_size)

    result = {'loc': loc_preds, 'cls': cls_preds}
    if motion_state:
        c2, n2 = offs[2]
        result['state'] = out[:, :, c2:c2 + n2].reshape(N, -1, 3)
    return result


# ---------------------------------------------------------------------------
# Pure-JAX reference (per head) + synthetic param init for testing.
# ---------------------------------------------------------------------------
def head_ref(x_nhwc, params):
    w1, b1, gamma, beta, mean, var, w2, b2 = params
    eps = 1e-5
    y = lax.conv_general_dilated(
        x_nhwc, w1, window_strides=(1, 1), padding='SAME',
        dimension_numbers=('NHWC', 'HWIO', 'NHWC')) + b1
    y = (y - mean) / jnp.sqrt(var + eps) * gamma + beta
    y = jnp.maximum(y, 0.0)
    y = jnp.einsum('nhwc,cd->nhwd', y, w2) + b2
    return y


def init_head_params(key, cin, c1, cout):
    ks = jax.random.split(key, 8)
    w1 = 0.1 * jax.random.normal(ks[0], (3, 3, cin, c1), jnp.float32)
    b1 = 0.1 * jax.random.normal(ks[1], (c1,), jnp.float32)
    gamma = 1.0 + 0.1 * jax.random.normal(ks[2], (c1,), jnp.float32)
    beta = 0.1 * jax.random.normal(ks[3], (c1,), jnp.float32)
    mean = 0.1 * jax.random.normal(ks[4], (c1,), jnp.float32)
    var = 1.0 + 0.1 * jnp.abs(jax.random.normal(ks[5], (c1,), jnp.float32))
    w2 = 0.1 * jax.random.normal(ks[6], (c1, cout), jnp.float32)
    b2 = 0.1 * jax.random.normal(ks[7], (cout,), jnp.float32)
    return (w1, b1, gamma, beta, mean, var, w2, b2)


if __name__ == "__main__":
    # Synthetic config: category_num=2, anchor_num=2, box_code_size=6,
    # only_det=True -> out_seq_len=1, binary=True -> channel=32, motion_state=True.
    category_num = 2
    anchor_num = 2
    box_code_size = 6
    out_seq_len = 1
    channel = 32
    N, H, W = 2, 16, 16

    key = jax.random.PRNGKey(0)
    kx, k1, k2, k3 = jax.random.split(key, 4)
    x_nchw = jax.random.normal(kx, (N, channel, H, W), jnp.float32)

    p_cls = init_head_params(k1, channel, channel, category_num * anchor_num)
    p_reg = init_head_params(
        k2, channel, channel, anchor_num * box_code_size * out_seq_len)
    p_mot = init_head_params(k3, channel, channel, 3 * anchor_num)

    # --- float32 run (exact-precision path) -------------------------------
    result = faf_mgda_forward(
        x_nchw, p_cls, p_reg, p_mot,
        category_num=category_num, anchor_num=anchor_num,
        out_seq_len=out_seq_len, box_code_size=box_code_size,
        motion_state=True, compute_dtype=jnp.float32)
    jax.block_until_ready(result)

    x_nhwc = jnp.transpose(x_nchw, (0, 2, 3, 1))
    ref_cls = head_ref(x_nhwc, p_cls).reshape(N, -1, category_num)
    ref_loc = head_ref(x_nhwc, p_reg).reshape(
        -1, H, W, anchor_num, out_seq_len, box_code_size)
    ref_mot = head_ref(x_nhwc, p_mot).reshape(N, -1, 3)
    assert jnp.allclose(result['cls'], ref_cls, rtol=1e-3, atol=1e-3)
    assert jnp.allclose(result['loc'], ref_loc, rtol=1e-3, atol=1e-3)
    assert jnp.allclose(result['state'], ref_mot, rtol=1e-3, atol=1e-3)

    # Shape checks matching the PyTorch module's outputs.
    assert result['cls'].shape == (N, H * W * anchor_num, category_num)
    assert result['loc'].shape == (N, H, W, anchor_num, out_seq_len, box_code_size)
    assert result['state'].shape == (N, H * W * anchor_num, 3)

    # --- bfloat16 operand run (v6e/v7x fast path; f32 accumulation) -------
    result_bf16 = faf_mgda_forward(
        x_nchw, p_cls, p_reg, p_mot,
        category_num=category_num, anchor_num=anchor_num,
        out_seq_len=out_seq_len, box_code_size=box_code_size,
        motion_state=True, compute_dtype=jnp.bfloat16)
    jax.block_until_ready(result_bf16)
    assert jnp.allclose(result_bf16['cls'], ref_cls, rtol=5e-2, atol=5e-2)
    assert jnp.allclose(result_bf16['loc'], ref_loc, rtol=5e-2, atol=5e-2)
    assert jnp.allclose(result_bf16['state'], ref_mot, rtol=5e-2, atol=5e-2)

    print("KERNEL_OK")
</pallas_src>

<mosaic_0001>
module attributes {stable_mosaic.version = 11 : i64} {
  func.func @_fused_heads_kernel(%arg0: i32, %arg1: memref<1x256x288xf32, #tpu.memory_space<vmem>>, %arg2: memref<288x128xf32, #tpu.memory_space<vmem>>, %arg3: memref<1x128xf32, #tpu.memory_space<vmem>>, %arg4: memref<128x128xf32, #tpu.memory_space<vmem>>, %arg5: memref<1x128xf32, #tpu.memory_space<vmem>>, %arg6: memref<1x256x128xf32, #tpu.memory_space<vmem>>) attributes {dimension_semantics = [#tpu.dimension_semantics<parallel>], iteration_bounds = array<i64: 2>, scalar_prefetch = 0 : i64, scratch_operands = 0 : i64, tpu.core_type = #tpu.core_type<tc>, window_params = [{transform_indices = @transform_0, window_bounds = array<i64: 1, 256, 288>}, {pipeline_mode = #tpu.pipeline_mode<synchronous>, transform_indices = @transform_1, window_bounds = array<i64: 288, 128>}, {pipeline_mode = #tpu.pipeline_mode<synchronous>, transform_indices = @transform_2, window_bounds = array<i64: 1, 128>}, {pipeline_mode = #tpu.pipeline_mode<synchronous>, transform_indices = @transform_3, window_bounds = array<i64: 128, 128>}, {pipeline_mode = #tpu.pipeline_mode<synchronous>, transform_indices = @transform_4, window_bounds = array<i64: 1, 128>}, {transform_indices = @transform_5, window_bounds = array<i64: 1, 256, 128>}]} {
    %c0 = arith.constant 0 : index
    %c0_0 = arith.constant 0 : index
    %c0_1 = arith.constant 0 : index
    %0 = vector.load %arg1[%c0, %c0_0, %c0_1] : memref<1x256x288xf32, #tpu.memory_space<vmem>>, vector<1x256x288xf32>
    %1 = vector.shape_cast %0 : vector<1x256x288xf32> to vector<256x288xf32>
    %c0_2 = arith.constant 0 : index
    %c0_3 = arith.constant 0 : index
    %2 = vector.load %arg2[%c0_2, %c0_3] : memref<288x128xf32, #tpu.memory_space<vmem>>, vector<288x128xf32>
    %cst = arith.constant dense<0.000000e+00> : vector<256x128xf32>
    %3 = tpu.matmul %1, %2, %cst {dimension_numbers = #tpu.dot_dimension_numbers<[1], [0], [0], [1], [0, 0, 1, 1], [], []>} : vector<256x288xf32>, vector<288x128xf32>, vector<256x128xf32> -> vector<256x128xf32>
    %c0_4 = arith.constant 0 : index
    %c0_5 = arith.constant 0 : index
    %4 = vector.load %arg3[%c0_4, %c0_5] : memref<1x128xf32, #tpu.memory_space<vmem>>, vector<1x128xf32>
    %5 = vector.shape_cast %4 : vector<1x128xf32> to vector<128xf32>
    %6 = vector.shape_cast %5 : vector<128xf32> to vector<1x128xf32>
    %7 = vector.broadcast %6 : vector<1x128xf32> to vector<256x128xf32>
    %8 = arith.addf %3, %7 : vector<256x128xf32>
    %cst_6 = arith.constant 0.000000e+00 : f32
    %9 = vector.broadcast %cst_6 : f32 to vector<256x128xf32>
    %10 = arith.maximumf %8, %9 : vector<256x128xf32>
    %c0_7 = arith.constant 0 : index
    %c0_8 = arith.constant 0 : index
    %11 = vector.load %arg4[%c0_7, %c0_8] : memref<128x128xf32, #tpu.memory_space<vmem>>, vector<128x128xf32>
    %cst_9 = arith.constant dense<0.000000e+00> : vector<256x128xf32>
    %12 = tpu.matmul %10, %11, %cst_9 {dimension_numbers = #tpu.dot_dimension_numbers<[1], [0], [0], [1], [0, 0, 1, 1], [], []>} : vector<256x128xf32>, vector<128x128xf32>, vector<256x128xf32> -> vector<256x128xf32>
    %c0_10 = arith.constant 0 : index
    %c0_11 = arith.constant 0 : index
    %13 = vector.load %arg5[%c0_10, %c0_11] : memref<1x128xf32, #tpu.memory_space<vmem>>, vector<1x128xf32>
    %14 = vector.shape_cast %13 : vector<1x128xf32> to vector<128xf32>
    %15 = vector.shape_cast %14 : vector<128xf32> to vector<1x128xf32>
    %16 = vector.broadcast %15 : vector<1x128xf32> to vector<256x128xf32>
    %17 = arith.addf %12, %16 : vector<256x128xf32>
    %c0_12 = arith.constant 0 : index
    %c0_13 = arith.constant 0 : index
    %c0_14 = arith.constant 0 : index
    %18 = vector.load %arg6[%c0_12, %c0_13, %c0_14] : memref<1x256x128xf32, #tpu.memory_space<vmem>>, vector<1x256x128xf32>
    %19 = vector.shape_cast %18 : vector<1x256x128xf32> to vector<256x128xf32>
    %20 = vector.shape_cast %17 : vector<256x128xf32> to vector<1x256x128xf32>
    tpu.vector_store %arg6[%c0_12, %c0_13, %c0_14], %20 {strides = array<i32>} : memref<1x256x128xf32, #tpu.memory_space<vmem>>, vector<1x256x128xf32>,
    return
  }
  func.func @transform_0(%arg0: i32) -> (i32, i32, i32) {
    %c0_i32 = arith.constant 0 : i32
    %c0_i32_0 = arith.constant 0 : i32
    %c0_i32_1 = arith.constant 0 : i32
    return %arg0, %c0_i32, %c0_i32_0 : i32, i32, i32
  }
  func.func @transform_1(%arg0: i32) -> (i32, i32) {
    %c0_i32 = arith.constant 0 : i32
    %c0_i32_0 = arith.constant 0 : i32
    %c0_i32_1 = arith.constant 0 : i32
    return %c0_i32, %c0_i32_0 : i32, i32
  }
  func.func @transform_2(%arg0: i32) -> (i32, i32) {
    %c0_i32 = arith.constant 0 : i32
    %c0_i32_0 = arith.constant 0 : i32
    %c0_i32_1 = arith.constant 0 : i32
    return %c0_i32, %c0_i32_0 : i32, i32
  }
  func.func @transform_3(%arg0: i32) -> (i32, i32) {
    %c0_i32 = arith.constant 0 : i32
    %c0_i32_0 = arith.constant 0 : i32
    %c0_i32_1 = arith.constant 0 : i32
    return %c0_i32, %c0_i32_0 : i32, i32
  }
  func.func @transform_4(%arg0: i32) -> (i32, i32) {
    %c0_i32 = arith.constant 0 : i32
    %c0_i32_0 = arith.constant 0 : i32
    %c0_i32_1 = arith.constant 0 : i32
    return %c0_i32, %c0_i32_0 : i32, i32
  }
  func.func @transform_5(%arg0: i32) -> (i32, i32, i32) {
    %c0_i32 = arith.constant 0 : i32
    %c0_i32_0 = arith.constant 0 : i32
    %c0_i32_1 = arith.constant 0 : i32
    return %arg0, %c0_i32, %c0_i32_0 : i32, i32, i32
  }
}

</mosaic_0001>

<llo_original>
// kernel: tpu_custom_call.1
$region0: #{tpu_custom_call.1}
  #allocation0 [shape = 'u32[]', space=smem, size = 0x4, offset = 0x4, fixed_abs, tag = 'smem constant byte address 0x4 - core index']
  #allocation1 [shape = 'u32[72,128]{1,0:T(1,128)}', space=vmem, size = 0x9000, scoped, tag = 'internal scratch']
  %s0 = inlined_call_operand.vmem [shape: f32[2,256,288], index: 0, kind: input, shape index: {}]
  %s1 = inlined_call_operand.vmem [shape: f32[288,128], index: 1, kind: input, shape index: {}]
  %s2 = inlined_call_operand.vmem [shape: f32[1,128], index: 2, kind: input, shape index: {}]
  %s3 = inlined_call_operand.vmem [shape: f32[128,128], index: 3, kind: input, shape index: {}]
  %s4 = inlined_call_operand.vmem [shape: f32[1,128], index: 4, kind: input, shape index: {}]
  %s5 = inlined_call_operand.hbm [shape: f32[2,256,128], index: 5, kind: output, shape index: {}]
  %s6 = sld [smem:[#allocation0]]
  $region53: #{tpu_custom_call.1} parent=0
    _
  %s8 = ssub.s32 1, %s6
  %s9 = scalar_select 0, %s8, %s6
  $region1: #{tpu_custom_call.1} parent=0
    #allocation2 [shape = 'u8[262144]{0}', space=vmem, size = 0x40000, scoped, tag = 'output window, operand 0']
    #allocation3 [shape = 's32[2]{0}', space=sflag, size = 0x8, scoped, tag = 'scoped memory for tpu_custom_call.1']
    %10 = vsyncpa [#allocation3], 0
    %s11 = scalar_lea.sflag [#allocation3], 1
    %12 = vsyncpa %s11, 0
    loop: start=0, step=1, limit=4
    $region2: #{tpu_custom_call.1} parent=1 // loop_pre_header
      _
    $region3: #{tpu_custom_call.1} parent=1 // loop_header
      %s14 = sphi 0, %s18
      %p15 = scmp.ge.s32.totalorder %s14, 4
      %s24 = sphi 0, %s26
      %s27 = sphi 0, %s24
      %s28 = sphi 0, %s27
      %s44 = sphi 0, %s28
      %s48 = sphi 0, %s48
      %s50 = sphi 0, %s48
      %s51 = sphi 0, %s50
      %s65 = sphi 0, %s51
      %s69 = sphi 0, %s69
      %s71 = sphi 0, %s69
      %s72 = sphi 0, %s71
      %s86 = sphi 0, %s72
      %s90 = sphi 0, %s90
      %s92 = sphi 0, %s90
      %s93 = sphi 0, %s92
      %s107 = sphi 0, %s93
      %s111 = sphi 0, %s111
      %s113 = sphi 0, %s111
      %s114 = sphi 0, %s113
      %s128 = sphi 0, %s114
      %s134 = sphi 0, %s136
      %s137 = sphi 0, %s134
      %s138 = sphi 0, %s137
      %s154 = sphi 0, %s138
    $region4: #{tpu_custom_call.1} parent=1 // loop_header_branch
      %17 = sbr.rel (%p15) target = $region8
    $region5: #{tpu_custom_call.1} parent=1 // loop_body
      %s19 = ssub.s32 %s14, 1
      %s20 = ssub.s32 %s14, 2
      %s21 = sadd.s32 %s14, 1
      %s22 = ssub.s32 %s14, %s21
      %p23 = scmp.eq.s32.totalorder %s22, 0
      %s25 = sadd.s32 %s24, 1
      %s26 = scalar_select %p23, %s24, %s25
      %p29 = pneg %p23
      %p30 = scmp.eq.s32.totalorder %s14, 1
      %p31 = por %p29, %p30
      %p32 = scmp.ne.s32.totalorder %s24, %s27
      %p33 = scmp.eq.s32.totalorder %s14, 0
      %p34 = por %p32, %p33
      %p35 = scmp.ne.s32.totalorder %s24, %s27
      %p36 = scmp.eq.s32.totalorder %s19, 1
      %p37 = por %p35, %p36
      %p38 = scmp.ne.s32.totalorder %s27, %s28
      %p39 = scmp.eq.s32.totalorder %s19, 0
      %p40 = por %p38, %p39
      %p41 = scmp.ne.s32.totalorder %s27, %s28
      %p42 = scmp.eq.s32.totalorder %s20, 1
      %p43 = por %p41, %p42
      %p45 = scmp.ne.s32.totalorder %s28, %s44
      %p46 = scmp.eq.s32.totalorder %s20, 0
      %p47 = por %p45, %p46
      %s49 = sadd.s32 %s48, 1
      %p52 = scmp.eq.s32.totalorder %s14, 1
      %p53 = scmp.ne.s32.totalorder %s48, %s50
      %p54 = scmp.eq.s32.totalorder %s14, 0
      %p55 = por %p53, %p54
      %p56 = scmp.ne.s32.totalorder %s48, %s50
      %p57 = scmp.eq.s32.totalorder %s19, 1
      %p58 = por %p56, %p57
      %p59 = scmp.ne.s32.totalorder %s50, %s51
      %p60 = scmp.eq.s32.totalorder %s19, 0
      %p61 = por %p59, %p60
      %p62 = scmp.ne.s32.totalorder %s50, %s51
      %p63 = scmp.eq.s32.totalorder %s20, 1
      %p64 = por %p62, %p63
      %p66 = scmp.ne.s32.totalorder %s51, %s65
      %p67 = scmp.eq.s32.totalorder %s20, 0
      %p68 = por %p66, %p67
      %s70 = sadd.s32 %s69, 1
      %p73 = scmp.eq.s32.totalorder %s14, 1
      %p74 = scmp.ne.s32.totalorder %s69, %s71
      %p75 = scmp.eq.s32.totalorder %s14, 0
      %p76 = por %p74, %p75
      %p77 = scmp.ne.s32.totalorder %s69, %s71
      %p78 = scmp.eq.s32.totalorder %s19, 1
      %p79 = por %p77, %p78
      %p80 = scmp.ne.s32.totalorder %s71, %s72
      %p81 = scmp.eq.s32.totalorder %s19, 0
      %p82 = por %p80, %p81
      %p83 = scmp.ne.s32.totalorder %s71, %s72
      %p84 = scmp.eq.s32.totalorder %s20, 1
      %p85 = por %p83, %p84
      %p87 = scmp.ne.s32.totalorder %s72, %s86
      %p88 = scmp.eq.s32.totalorder %s20, 0
      %p89 = por %p87, %p88
      %s91 = sadd.s32 %s90, 1
      %p94 = scmp.eq.s32.totalorder %s14, 1
      %p95 = scmp.ne.s32.totalorder %s90, %s92
      %p96 = scmp.eq.s32.totalorder %s14, 0
      %p97 = por %p95, %p96
      %p98 = scmp.ne.s32.totalorder %s90, %s92
      %p99 = scmp.eq.s32.totalorder %s19, 1
      %p100 = por %p98, %p99
      %p101 = scmp.ne.s32.totalorder %s92, %s93
      %p102 = scmp.eq.s32.totalorder %s19, 0
      %p103 = por %p101, %p102
      %p104 = scmp.ne.s32.totalorder %s92, %s93
      %p105 = scmp.eq.s32.totalorder %s20, 1
      %p106 = por %p104, %p105
      %p108 = scmp.ne.s32.totalorder %s93, %s107
      %p109 = scmp.eq.s32.totalorder %s20, 0
      %p110 = por %p108, %p109
      %s112 = sadd.s32 %s111, 1
      %p115 = scmp.eq.s32.totalorder %s14, 1
      %p116 = scmp.ne.s32.totalorder %s111, %s113
      %p117 = scmp.eq.s32.totalorder %s14, 0
      %p118 = por %p116, %p117
      %p119 = scmp.ne.s32.totalorder %s111, %s113
      %p120 = scmp.eq.s32.totalorder %s19, 1
      %p121 = por %p119, %p120
      %p122 = scmp.ne.s32.totalorder %s113, %s114
      %p123 = scmp.eq.s32.totalorder %s19, 0
      %p124 = por %p122, %p123
      %p125 = scmp.ne.s32.totalorder %s113, %s114
      %p126 = scmp.eq.s32.totalorder %s20, 1
      %p127 = por %p125, %p126
      %p129 = scmp.ne.s32.totalorder %s114, %s128
      %p130 = scmp.eq.s32.totalorder %s20, 0
      %p131 = por %p129, %p130
      %s132 = ssub.s32 %s14, %s21
      %p133 = scmp.eq.s32.totalorder %s132, 0
      %s135 = sadd.s32 %s134, 1
      %s136 = scalar_select %p133, %s134, %s135
      %p139 = pneg %p133
      %p140 = scmp.eq.s32.totalorder %s14, 1
      %p141 = por %p139, %p140
      %p142 = scmp.ne.s32.totalorder %s134, %s137
      %p143 = scmp.eq.s32.totalorder %s14, 0
      %p144 = por %p142, %p143
      %p145 = scmp.ne.s32.totalorder %s134, %s137
      %p146 = scmp.eq.s32.totalorder %s19, 1
      %p147 = por %p145, %p146
      %p148 = scmp.ne.s32.totalorder %s137, %s138
      %p149 = scmp.eq.s32.totalorder %s19, 0
      %p150 = por %p148, %p149
      %p151 = scmp.ne.s32.totalorder %s137, %s138
      %p152 = scmp.eq.s32.totalorder %s20, 1
      %p153 = por %p151, %p152
      %p155 = scmp.ne.s32.totalorder %s138, %s154
      %p156 = scmp.eq.s32.totalorder %s20, 0
      %p157 = por %p155, %p156
      %p158 = scmp.le.s32.totalorder 1, %s14
      %p159 = scmp.lt.s32.totalorder %s14, 3
      %p160 = pnand %p158, %p159
      %p161 = pneg %p160
      // Predicated region
      $region9: #{tpu_custom_call.1} parent=5 // pred_check
        _
      $region10: #{tpu_custom_call.1} parent=5 // pred_check_branch
        %163 = sbr.rel (%p160) target = $region12
      $region11: #{tpu_custom_call.1} parent=5 // pred_region
        %s164 = ssub.s32 %s14, 1
        // Predicated region
        $region13: #{tpu_custom_call.1} parent=11 // pred_check
          %p165 = pneg %p61
        $region14: #{tpu_custom_call.1} parent=11 // pred_check_branch
          %167 = sbr.rel (%p165) target = $region16
        $region15: #{tpu_custom_call.1} parent=11 // pred_region
          _
        $region16: #{tpu_custom_call.1} parent=11 // pred_fallthru
          _
        // Predicated region
        $region17: #{tpu_custom_call.1} parent=11 // pred_check
          %p168 = pneg %p82
        $region18: #{tpu_custom_call.1} parent=11 // pred_check_branch
          %170 = sbr.rel (%p168) target = $region20
        $region19: #{tpu_custom_call.1} parent=11 // pred_region
          _
        $region20: #{tpu_custom_call.1} parent=11 // pred_fallthru
          _
        // Predicated region
        $region21: #{tpu_custom_call.1} parent=11 // pred_check
          %p171 = pneg %p103
        $region22: #{tpu_custom_call.1} parent=11 // pred_check_branch
          %173 = sbr.rel (%p171) target = $region24
        $region23: #{tpu_custom_call.1} parent=11 // pred_region
          _
        $region24: #{tpu_custom_call.1} parent=11 // pred_fallthru
          _
        // Predicated region
        $region25: #{tpu_custom_call.1} parent=11 // pred_check
          %p174 = pneg %p124
        $region26: #{tpu_custom_call.1} parent=11 // pred_check_branch
          %176 = sbr.rel (%p174) target = $region28
        $region27: #{tpu_custom_call.1} parent=11 // pred_region
          _
        $region28: #{tpu_custom_call.1} parent=11 // pred_fallthru
          _
      $region12: #{tpu_custom_call.1} parent=5 // pred_fallthru
        _
      %p177 = scmp.lt.s32.totalorder %s14, 2
      // Predicated region
      $region29: #{tpu_custom_call.1} parent=5 // pred_check
        %p178 = pneg %p177
      $region30: #{tpu_custom_call.1} parent=5 // pred_check_branch
        %180 = sbr.rel (%p178) target = $region32
      $region31: #{tpu_custom_call.1} parent=5 // pred_region
        // Predicated region
        $region33: #{tpu_custom_call.1} parent=31 // pred_check
          %p181 = pneg %p34
        $region34: #{tpu_custom_call.1} parent=31 // pred_check_branch
          %183 = sbr.rel (%p181) target = $region36
        $region35: #{tpu_custom_call.1} parent=31 // pred_region
          %p184 = scmp.lt.s32.totalorder %s14, 1
          %s185 = scalar_select %p184, %s14, 1
          %s186 = smul.addr %s185, 96
          %s187 = smul.addr %s186, 8
          %s188 = scalar_lea.vmem %s0, %s187
        $region36: #{tpu_custom_call.1} parent=31 // pred_fallthru
          _
      $region32: #{tpu_custom_call.1} parent=5 // pred_fallthru
        _
      %p189 = scmp.le.s32.totalorder 1, %s14
      %p190 = scmp.lt.s32.totalorder %s14, 3
      %p191 = pnand %p189, %p190
      %p192 = pneg %p191
      // Predicated region
      $region37: #{tpu_custom_call.1} parent=5 // pred_check
        _
      $region38: #{tpu_custom_call.1} parent=5 // pred_check_branch
        %194 = sbr.rel (%p191) target = $region40
      $region39: #{tpu_custom_call.1} parent=5 // pred_region
        %s195 = ssub.s32 %s14, 1
        %p196 = scmp.lt.s32.totalorder %s19, 1
        %s197 = scalar_select %p196, %s19, 1
        %s198 = smul.addr %s197, 96
        %s199 = smul.addr %s198, 8
        %s200 = scalar_lea.vmem %s0, %s199
        %p201 = pneg %p40
        %p202 = pneg %p37
        %p203 = pneg %p61
        %p204 = pneg %p58
        %p205 = pneg %p82
        %p206 = pneg %p79
        %p207 = pneg %p103
        %p208 = pneg %p100
        %p209 = pneg %p124
        %p210 = pneg %p121
        %p211 = pneg %p150
        %p212 = pneg %p147
        %s213 = sand.u32 %s137, 1
        %s214 = scalar_lea.sflag [#allocation3], %s213
        %s215 = sand.u32 %s137, 1
        %s216 = smul.addr %s215, 256
        %s217 = scalar_lea.vmem [#allocation2], %s216
        %p218 = scmp.lt.s32.totalorder %s19, 1
        %s219 = scalar_select %p218, %s19, 1
        %s220 = smul.addr %s219, 96
        %s221 = smul.addr %s220, 8
        %s222 = scalar_lea.vmem %s0, %s221
        %v223 = vld [vmem:[%s222] sm:$0xff]
        %v224 = vld [vmem:[%s222 + $0x8] sm:$0xff]
        %v225 = vld [vmem:[%s222 + $0x10] sm:$0xff]
        %v226 = vld [vmem:[%s222 + $0x18] sm:$0xff]
        %v227 = vld [vmem:[%s222 + $0x20] sm:$0xff]
        %v228 = vld [vmem:[%s222 + $0x28] sm:$0xff]
        %v229 = vld [vmem:[%s222 + $0x30] sm:$0xff]
        %v230 = vld [vmem:[%s222 + $0x38] sm:$0xff]
        %v231 = vld [vmem:[%s222 + $0x40] sm:$0xff]
        %v232 = vld [vmem:[%s222 + $0x48] sm:$0xff]
        %v233 = vld [vmem:[%s222 + $0x50] sm:$0xff]
        %v234 = vld [vmem:[%s222 + $0x58] sm:$0xff]
        %v235 = vld [vmem:[%s222 + $0x60] sm:$0xff]
        %v236 = vld [vmem:[%s222 + $0x68] sm:$0xff]
        %v237 = vld [vmem:[%s222 + $0x70] sm:$0xff]
        %v238 = vld [vmem:[%s222 + $0x78] sm:$0xff]
        %v239 = vld [vmem:[%s222 + $0x80] sm:$0xff]
        %v240 = vld [vmem:[%s222 + $0x88] sm:$0xff]
        %v241 = vld [vmem:[%s222 + $0x90] sm:$0xff]
        %v242 = vld [vmem:[%s222 + $0x98] sm:$0xff]
        %v243 = vld [vmem:[%s222 + $0xa0] sm:$0xff]
        %v244 = vld [vmem:[%s222 + $0xa8] sm:$0xff]
        %v245 = vld [vmem:[%s222 + $0xb0] sm:$0xff]
        %v246 = vld [vmem:[%s222 + $0xb8] sm:$0xff]
        %v247 = vld [vmem:[%s222 + $0xc0] sm:$0xff]
        %v248 = vld [vmem:[%s222 + $0xc8] sm:$0xff]
        %v249 = vld [vmem:[%s222 + $0xd0] sm:$0xff]
        %v250 = vld [vmem:[%s222 + $0xd8] sm:$0xff]
        %v251 = vld [vmem:[%s222 + $0xe0] sm:$0xff]
        %v252 = vld [vmem:[%s222 + $0xe8] sm:$0xff]
        %v253 = vld [vmem:[%s222 + $0xf0] sm:$0xff]
        %v254 = vld [vmem:[%s222 + $0xf8] sm:$0xff]
        %v255 = vld [vmem:[%s222 + $0x100] sm:$0xff]
        %v256 = vld [vmem:[%s222 + $0x108] sm:$0xff]
        %v257 = vld [vmem:[%s222 + $0x110] sm:$0xff]
        %v258 = vld [vmem:[%s222 + $0x118] sm:$0xff]
        %v259 = vld [vmem:[%s222 + $0x120] sm:$0xff]
        %v260 = vld [vmem:[%s222 + $0x128] sm:$0xff]
        %v261 = vld [vmem:[%s222 + $0x130] sm:$0xff]
        %v262 = vld [vmem:[%s222 + $0x138] sm:$0xff]
        %v263 = vld [vmem:[%s222 + $0x140] sm:$0xff]
        %v264 = vld [vmem:[%s222 + $0x148] sm:$0xff]
        %v265 = vld [vmem:[%s222 + $0x150] sm:$0xff]
        %v266 = vld [vmem:[%s222 + $0x158] sm:$0xff]
        %v267 = vld [vmem:[%s222 + $0x160] sm:$0xff]
        %v268 = vld [vmem:[%s222 + $0x168] sm:$0xff]
        %v269 = vld [vmem:[%s222 + $0x170] sm:$0xff]
        %v270 = vld [vmem:[%s222 + $0x178] sm:$0xff]
        %v271 = vld [vmem:[%s222 + $0x180] sm:$0xff]
        %v272 = vld [vmem:[%s222 + $0x188] sm:$0xff]
        %v273 = vld [vmem:[%s222 + $0x190] sm:$0xff]
        %v274 = vld [vmem:[%s222 + $0x198] sm:$0xff]
        %v275 = vld [vmem:[%s222 + $0x1a0] sm:$0xff]
        %v276 = vld [vmem:[%s222 + $0x1a8] sm:$0xff]
        %v277 = vld [vmem:[%s222 + $0x1b0] sm:$0xff]
        %v278 = vld [vmem:[%s222 + $0x1b8] sm:$0xff]
        %v279 = vld [vmem:[%s222 + $0x1c0] sm:$0xff]
        %v280 = vld [vmem:[%s222 + $0x1c8] sm:$0xff]
        %v281 = vld [vmem:[%s222 + $0x1d0] sm:$0xff]
        %v282 = vld [vmem:[%s222 + $0x1d8] sm:$0xff]
        %v283 = vld [vmem:[%s222 + $0x1e0] sm:$0xff]
        %v284 = vld [vmem:[%s222 + $0x1e8] sm:$0xff]
        %v285 = vld [vmem:[%s222 + $0x1f0] sm:$0xff]
        %v286 = vld [vmem:[%s222 + $0x1f8] sm:$0xff]
        %v287 = vld [vmem:[%s222 + $0x200] sm:$0xff]
        %v288 = vld [vmem:[%s222 + $0x208] sm:$0xff]
        %v289 = vld [vmem:[%s222 + $0x210] sm:$0xff]
        %v290 = vld [vmem:[%s222 + $0x218] sm:$0xff]
        %v291 = vld [vmem:[%s222 + $0x220] sm:$0xff]
        %v292 = vld [vmem:[%s222 + $0x228] sm:$0xff]
        %v293 = vld [vmem:[%s222 + $0x230] sm:$0xff]
        %v294 = vld [vmem:[%s222 + $0x238] sm:$0xff]
        %v295 = vld [vmem:[%s222 + $0x240] sm:$0xff]
        %v296 = vld [vmem:[%s222 + $0x248] sm:$0xff]
        %v297 = vld [vmem:[%s222 + $0x250] sm:$0xff]
        %v298 = vld [vmem:[%s222 + $0x258] sm:$0xff]
        %v299 = vld [vmem:[%s222 + $0x260] sm:$0xff]
        %v300 = vld [vmem:[%s222 + $0x268] sm:$0xff]
        %v301 = vld [vmem:[%s222 + $0x270] sm:$0xff]
        %v302 = vld [vmem:[%s222 + $0x278] sm:$0xff]
        %v303 = vld [vmem:[%s222 + $0x280] sm:$0xff]
        %v304 = vld [vmem:[%s222 + $0x288] sm:$0xff]
        %v305 = vld [vmem:[%s222 + $0x290] sm:$0xff]
        %v306 = vld [vmem:[%s222 + $0x298] sm:$0xff]
        %v307 = vld [vmem:[%s222 + $0x2a0] sm:$0xff]
        %v308 = vld [vmem:[%s222 + $0x2a8] sm:$0xff]
        %v309 = vld [vmem:[%s222 + $0x2b0] sm:$0xff]
        %v310 = vld [vmem:[%s222 + $0x2b8] sm:$0xff]
        %v311 = vld [vmem:[%s222 + $0x2c0] sm:$0xff]
        %v312 = vld [vmem:[%s222 + $0x2c8] sm:$0xff]
        %v313 = vld [vmem:[%s222 + $0x2d0] sm:$0xff]
        %v314 = vld [vmem:[%s222 + $0x2d8] sm:$0xff]
        %v315 = vld [vmem:[%s222 + $0x2e0] sm:$0xff]
        %v316 = vld [vmem:[%s222 + $0x2e8] sm:$0xff]
        %v317 = vld [vmem:[%s222 + $0x2f0] sm:$0xff]
        %v318 = vld [vmem:[%s222 + $0x2f8] sm:$0xff]
        %v319 = vld [vmem:[%s1] sm:$0xff]
        %v320 = vld [vmem:[%s1 + $0x8] sm:$0xff]
        %v321 = vld [vmem:[%s1 + $0x10] sm:$0xff]
        %v322 = vld [vmem:[%s1 + $0x18] sm:$0xff]
        %v323 = vld [vmem:[%s1 + $0x20] sm:$0xff]
        %v324 = vld [vmem:[%s1 + $0x28] sm:$0xff]
        %v325 = vld [vmem:[%s1 + $0x30] sm:$0xff]
        %v326 = vld [vmem:[%s1 + $0x38] sm:$0xff]
        %v327 = vld [vmem:[%s1 + $0x40] sm:$0xff]
        %v328 = vld [vmem:[%s1 + $0x48] sm:$0xff]
        %v329 = vld [vmem:[%s1 + $0x50] sm:$0xff]
        %v330 = vld [vmem:[%s1 + $0x58] sm:$0xff]
        %v331 = vld [vmem:[%s1 + $0x60] sm:$0xff]
        %v332 = vld [vmem:[%s1 + $0x68] sm:$0xff]
        %v333 = vld [vmem:[%s1 + $0x70] sm:$0xff]
        %v334 = vld [vmem:[%s1 + $0x78] sm:$0xff]
        %v335 = vld [vmem:[%s1 + $0x80] sm:$0xff]
        %v336 = vld [vmem:[%s1 + $0x88] sm:$0xff]
        %v337 = vld [vmem:[%s1 + $0x90] sm:$0xff]
        %v338 = vld [vmem:[%s1 + $0x98] sm:$0xff]
        %v339 = vld [vmem:[%s1 + $0xa0] sm:$0xff]
        %v340 = vld [vmem:[%s1 + $0xa8] sm:$0xff]
        %v341 = vld [vmem:[%s1 + $0xb0] sm:$0xff]
        %v342 = vld [vmem:[%s1 + $0xb8] sm:$0xff]
        %v343 = vld [vmem:[%s1 + $0xc0] sm:$0xff]
        %v344 = vld [vmem:[%s1 + $0xc8] sm:$0xff]
        %v345 = vld [vmem:[%s1 + $0xd0] sm:$0xff]
        %v346 = vld [vmem:[%s1 + $0xd8] sm:$0xff]
        %v347 = vld [vmem:[%s1 + $0xe0] sm:$0xff]
        %v348 = vld [vmem:[%s1 + $0xe8] sm:$0xff]
        %v349 = vld [vmem:[%s1 + $0xf0] sm:$0xff]
        %v350 = vld [vmem:[%s1 + $0xf8] sm:$0xff]
        %v351 = vld [vmem:[%s1 + $0x100] sm:$0xff]
        %v352 = vld [vmem:[%s1 + $0x108] sm:$0xff]
        %v353 = vld [vmem:[%s1 + $0x110] sm:$0xff]
        %v354 = vld [vmem:[%s1 + $0x118] sm:$0xff]
        %v355 = vld [vmem:[%s2] sm:$0x1]
        %v357 = vperm.slane %v355, 0
        %vm359 = vcmask 261120
        %v361 = vsel %vm359, %v225, 0
        %v364 = vsel %vm359, %v228, 0
        %v367 = vsel %vm359, %v231, 0
        %v370 = vsel %vm359, %v234, 0
        %v373 = vsel %vm359, %v237, 0
        %v376 = vsel %vm359, %v240, 0
        %v379 = vsel %vm359, %v243, 0
        %v382 = vsel %vm359, %v246, 0
        %v385 = vsel %vm359, %v249, 0
        %v388 = vsel %vm359, %v252, 0
        %v391 = vsel %vm359, %v255, 0
        %v394 = vsel %vm359, %v258, 0
        %v397 = vsel %vm359, %v261, 0
        %v400 = vsel %vm359, %v264, 0
        %v403 = vsel %vm359, %v267, 0
        %v406 = vsel %vm359, %v270, 0
        %v409 = vsel %vm359, %v273, 0
        %v412 = vsel %vm359, %v276, 0
        %v415 = vsel %vm359, %v279, 0
        %v418 = vsel %vm359, %v282, 0
        %v421 = vsel %vm359, %v285, 0
        %v424 = vsel %vm359, %v288, 0
        %v427 = vsel %vm359, %v291, 0
        %v430 = vsel %vm359, %v294, 0
        %v433 = vsel %vm359, %v297, 0
        %v436 = vsel %vm359, %v300, 0
        %v439 = vsel %vm359, %v303, 0
        %v442 = vsel %vm359, %v306, 0
        %v445 = vsel %vm359, %v309, 0
        %v448 = vsel %vm359, %v312, 0
        %v451 = vsel %vm359, %v315, 0
        %v454 = vsel %vm359, %v318, 0
        %456 = vmatpush.msra.mxu0 %v334
        %457 = vmatpush.msra.mxu0 %v333
        %458 = vmatpush.msra.mxu0 %v332
        %459 = vmatpush.msra.mxu0 %v331
        %460 = vmatpush.msra.mxu0 %v330
        %461 = vmatpush.msra.mxu0 %v329
        %462 = vmatpush.msra.mxu0 %v328
        %463 = vmatpush.msra.mxu0 %v327
        %464 = vmatpush.msra.mxu0 %v326
        %465 = vmatpush.msra.mxu0 %v325
        %466 = vmatpush.msra.mxu0 %v324
        %467 = vmatpush.msra.mxu0 %v323
        %468 = vmatpush.msra.mxu0 %v322
        %469 = vmatpush.msra.mxu0 %v321
        %470 = vmatpush.msra.mxu0 %v320
        %471 = vmatpush.msra.mxu0 %v319
        %472 = vmatmul.f32.gmra.mxu0 %v223
        %v473 = vpop.f32.mrf.mxu0
        %v474 = vadd.f32 %v357, %v473
        %475 = vmatmul.f32.gmra.mxu0 %v226
        %v476 = vpop.f32.mrf.mxu0
        %v477 = vadd.f32 %v357, %v476
        %478 = vmatmul.f32.gmra.mxu0 %v229
        %v479 = vpop.f32.mrf.mxu0
        %v480 = vadd.f32 %v357, %v479
        %481 = vmatmul.f32.gmra.mxu0 %v232
        %v482 = vpop.f32.mrf.mxu0
        %v483 = vadd.f32 %v357, %v482
        %484 = vmatmul.f32.gmra.mxu0 %v235
        %v485 = vpop.f32.mrf.mxu0
        %v486 = vadd.f32 %v357, %v485
        %487 = vmatmul.f32.gmra.mxu0 %v238
        %v488 = vpop.f32.mrf.mxu0
        %v489 = vadd.f32 %v357, %v488
        %490 = vmatmul.f32.gmra.mxu0 %v241
        %v491 = vpop.f32.mrf.mxu0
        %v492 = vadd.f32 %v357, %v491
        %493 = vmatmul.f32.gmra.mxu0 %v244
        %v494 = vpop.f32.mrf.mxu0
        %v495 = vadd.f32 %v357, %v494
        %496 = vmatmul.f32.gmra.mxu0 %v247
        %v497 = vpop.f32.mrf.mxu0
        %v498 = vadd.f32 %v357, %v497
        %499 = vmatmul.f32.gmra.mxu0 %v250
        %v500 = vpop.f32.mrf.mxu0
        %v501 = vadd.f32 %v357, %v500
        %502 = vmatmul.f32.gmra.mxu0 %v253
        %v503 = vpop.f32.mrf.mxu0
        %v504 = vadd.f32 %v357, %v503
        %505 = vmatmul.f32.gmra.mxu0 %v256
        %v506 = vpop.f32.mrf.mxu0
        %v507 = vadd.f32 %v357, %v506
        %508 = vmatmul.f32.gmra.mxu0 %v259
        %v509 = vpop.f32.mrf.mxu0
        %v510 = vadd.f32 %v357, %v509
        %511 = vmatmul.f32.gmra.mxu0 %v262
        %v512 = vpop.f32.mrf.mxu0
        %v513 = vadd.f32 %v357, %v512
        %514 = vmatmul.f32.gmra.mxu0 %v265
        %v515 = vpop.f32.mrf.mxu0
        %v516 = vadd.f32 %v357, %v515
        %517 = vmatmul.f32.gmra.mxu0 %v268
        %v518 = vpop.f32.mrf.mxu0
        %v519 = vadd.f32 %v357, %v518
        %520 = vmatmul.f32.gmra.mxu0 %v271
        %v521 = vpop.f32.mrf.mxu0
        %v522 = vadd.f32 %v357, %v521
        %523 = vmatmul.f32.gmra.mxu0 %v274
        %v524 = vpop.f32.mrf.mxu0
        %v525 = vadd.f32 %v357, %v524
        %526 = vmatmul.f32.gmra.mxu0 %v277
        %v527 = vpop.f32.mrf.mxu0
        %v528 = vadd.f32 %v357, %v527
        %529 = vmatmul.f32.gmra.mxu0 %v280
        %v530 = vpop.f32.mrf.mxu0
        %v531 = vadd.f32 %v357, %v530
        %532 = vmatmul.f32.gmra.mxu0 %v283
        %v533 = vpop.f32.mrf.mxu0
        %v534 = vadd.f32 %v357, %v533
        %535 = vmatmul.f32.gmra.mxu0 %v286
        %v536 = vpop.f32.mrf.mxu0
        %v537 = vadd.f32 %v357, %v536
        %538 = vmatmul.f32.gmra.mxu0 %v289
        %v539 = vpop.f32.mrf.mxu0
        %v540 = vadd.f32 %v357, %v539
        %541 = vmatmul.f32.gmra.mxu0 %v292
        %v542 = vpop.f32.mrf.mxu0
        %v543 = vadd.f32 %v357, %v542
        %544 = vmatmul.f32.gmra.mxu0 %v295
        %v545 = vpop.f32.mrf.mxu0
        %v546 = vadd.f32 %v357, %v545
        %547 = vmatmul.f32.gmra.mxu0 %v298
        %v548 = vpop.f32.mrf.mxu0
        %v549 = vadd.f32 %v357, %v548
        %550 = vmatmul.f32.gmra.mxu0 %v301
        %v551 = vpop.f32.mrf.mxu0
        %v552 = vadd.f32 %v357, %v551
        %553 = vmatmul.f32.gmra.mxu0 %v304
        %v554 = vpop.f32.mrf.mxu0
        %v555 = vadd.f32 %v357, %v554
        %556 = vmatmul.f32.gmra.mxu0 %v307
        %v557 = vpop.f32.mrf.mxu0
        %v558 = vadd.f32 %v357, %v557
        %559 = vmatmul.f32.gmra.mxu0 %v310
        %v560 = vpop.f32.mrf.mxu0
        %v561 = vadd.f32 %v357, %v560
        %562 = vmatmul.f32.gmra.mxu0 %v313
        %v563 = vpop.f32.mrf.mxu0
        %v564 = vadd.f32 %v357, %v563
        %565 = vmatmul.f32.gmra.mxu0 %v316
        %v566 = vpop.f32.mrf.mxu0
        %v567 = vadd.f32 %v357, %v566
        %568 = vdwg.mxu0
        %569 = vmatpush.msra.mxu0 %v350
        %570 = vmatpush.msra.mxu0 %v349
        %571 = vmatpush.msra.mxu0 %v348
        %572 = vmatpush.msra.mxu0 %v347
        %573 = vmatpush.msra.mxu0 %v346
        %574 = vmatpush.msra.mxu0 %v345
        %575 = vmatpush.msra.mxu0 %v344
        %576 = vmatpush.msra.mxu0 %v343
        %577 = vmatpush.msra.mxu0 %v342
        %578 = vmatpush.msra.mxu0 %v341
        %579 = vmatpush.msra.mxu0 %v340
        %580 = vmatpush.msra.mxu0 %v339
        %581 = vmatpush.msra.mxu0 %v338
        %582 = vmatpush.msra.mxu0 %v337
        %583 = vmatpush.msra.mxu0 %v336
        %584 = vmatpush.msra.mxu0 %v335
        %585 = vmatmul.f32.gmra.mxu0 %v224
        %v586 = vpop.f32.mrf.mxu0
        %v587 = vadd.f32 %v474, %v586
        %588 = vmatmul.f32.gmra.mxu0 %v227
        %v589 = vpop.f32.mrf.mxu0
        %v590 = vadd.f32 %v477, %v589
        %591 = vmatmul.f32.gmra.mxu0 %v230
        %v592 = vpop.f32.mrf.mxu0
        %v593 = vadd.f32 %v480, %v592
        %594 = vmatmul.f32.gmra.mxu0 %v233
        %v595 = vpop.f32.mrf.mxu0
        %v596 = vadd.f32 %v483, %v595
        %597 = vmatmul.f32.gmra.mxu0 %v236
        %v598 = vpop.f32.mrf.mxu0
        %v599 = vadd.f32 %v486, %v598
        %600 = vmatmul.f32.gmra.mxu0 %v239
        %v601 = vpop.f32.mrf.mxu0
        %v602 = vadd.f32 %v489, %v601
        %603 = vmatmul.f32.gmra.mxu0 %v242
        %v604 = vpop.f32.mrf.mxu0
        %v605 = vadd.f32 %v492, %v604
        %606 = vmatmul.f32.gmra.mxu0 %v245
        %v607 = vpop.f32.mrf.mxu0
        %v608 = vadd.f32 %v495, %v607
        %609 = vmatmul.f32.gmra.mxu0 %v248
        %v610 = vpop.f32.mrf.mxu0
        %v611 = vadd.f32 %v498, %v610
        %612 = vmatmul.f32.gmra.mxu0 %v251
        %v613 = vpop.f32.mrf.mxu0
        %v614 = vadd.f32 %v501, %v613
        %615 = vmatmul.f32.gmra.mxu0 %v254
        %v616 = vpop.f32.mrf.mxu0
        %v617 = vadd.f32 %v504, %v616
        %618 = vmatmul.f32.gmra.mxu0 %v257
        %v619 = vpop.f32.mrf.mxu0
        %v620 = vadd.f32 %v507, %v619
        %621 = vmatmul.f32.gmra.mxu0 %v260
        %v622 = vpop.f32.mrf.mxu0
        %v623 = vadd.f32 %v510, %v622
        %624 = vmatmul.f32.gmra.mxu0 %v263
        %v625 = vpop.f32.mrf.mxu0
        %v626 = vadd.f32 %v513, %v625
        %627 = vmatmul.f32.gmra.mxu0 %v266
        %v628 = vpop.f32.mrf.mxu0
        %v629 = vadd.f32 %v516, %v628
        %630 = vmatmul.f32.gmra.mxu0 %v269
        %v631 = vpop.f32.mrf.mxu0
        %v632 = vadd.f32 %v519, %v631
        %633 = vmatmul.f32.gmra.mxu0 %v272
        %v634 = vpop.f32.mrf.mxu0
        %v635 = vadd.f32 %v522, %v634
        %636 = vmatmul.f32.gmra.mxu0 %v275
        %v637 = vpop.f32.mrf.mxu0
        %v638 = vadd.f32 %v525, %v637
        %639 = vmatmul.f32.gmra.mxu0 %v278
        %v640 = vpop.f32.mrf.mxu0
        %v641 = vadd.f32 %v528, %v640
        %642 = vmatmul.f32.gmra.mxu0 %v281
        %v643 = vpop.f32.mrf.mxu0
        %v644 = vadd.f32 %v531, %v643
        %645 = vmatmul.f32.gmra.mxu0 %v284
        %v646 = vpop.f32.mrf.mxu0
        %v647 = vadd.f32 %v534, %v646
        %648 = vmatmul.f32.gmra.mxu0 %v287
        %v649 = vpop.f32.mrf.mxu0
        %v650 = vadd.f32 %v537, %v649
        %651 = vmatmul.f32.gmra.mxu0 %v290
        %v652 = vpop.f32.mrf.mxu0
        %v653 = vadd.f32 %v540, %v652
        %654 = vmatmul.f32.gmra.mxu0 %v293
        %v655 = vpop.f32.mrf.mxu0
        %v656 = vadd.f32 %v543, %v655
        %657 = vmatmul.f32.gmra.mxu0 %v296
        %v658 = vpop.f32.mrf.mxu0
        %v659 = vadd.f32 %v546, %v658
        %660 = vmatmul.f32.gmra.mxu0 %v299
        %v661 = vpop.f32.mrf.mxu0
        %v662 = vadd.f32 %v549, %v661
        %663 = vmatmul.f32.gmra.mxu0 %v302
        %v664 = vpop.f32.mrf.mxu0
        %v665 = vadd.f32 %v552, %v664
        %666 = vmatmul.f32.gmra.mxu0 %v305
        %v667 = vpop.f32.mrf.mxu0
        %v668 = vadd.f32 %v555, %v667
        %669 = vmatmul.f32.gmra.mxu0 %v308
        %v670 = vpop.f32.mrf.mxu0
        %v671 = vadd.f32 %v558, %v670
        %672 = vmatmul.f32.gmra.mxu0 %v311
        %v673 = vpop.f32.mrf.mxu0
        %v674 = vadd.f32 %v561, %v673
        %675 = vmatmul.f32.gmra.mxu0 %v314
        %v676 = vpop.f32.mrf.mxu0
        %v677 = vadd.f32 %v564, %v676
        %678 = vmatmul.f32.gmra.mxu0 %v317
        %v679 = vpop.f32.mrf.mxu0
        %v680 = vadd.f32 %v567, %v679
        %681 = vdwg.mxu0
        %682 = vmatpush.msra.mxu0 0.0
        %683 = vmatpush.msra.mxu0 0.0
        %684 = vmatpush.msra.mxu0 0.0
        %685 = vmatpush.msra.mxu0 0.0
        %686 = vmatpush.msra.mxu0 0.0
        %687 = vmatpush.msra.mxu0 0.0
        %688 = vmatpush.msra.mxu0 0.0
        %689 = vmatpush.msra.mxu0 0.0
        %690 = vmatpush.msra.mxu0 0.0
        %691 = vmatpush.msra.mxu0 0.0
        %692 = vmatpush.msra.mxu0 0.0
        %693 = vmatpush.msra.mxu0 0.0
        %694 = vmatpush.msra.mxu0 %v354
        %695 = vmatpush.msra.mxu0 %v353
        %696 = vmatpush.msra.mxu0 %v352
        %697 = vmatpush.msra.mxu0 %v351
        %698 = vmatmul.f32.gmra.mxu0 %v361
        %v699 = vpop.f32.mrf.mxu0
        %v700 = vadd.f32 %v587, %v699
        %701 = vmatmul.f32.gmra.mxu0 %v364
        %v702 = vpop.f32.mrf.mxu0
        %v703 = vadd.f32 %v590, %v702
        %704 = vmatmul.f32.gmra.mxu0 %v367
        %v705 = vpop.f32.mrf.mxu0
        %v706 = vadd.f32 %v593, %v705
        %707 = vmatmul.f32.gmra.mxu0 %v370
        %v708 = vpop.f32.mrf.mxu0
        %v709 = vadd.f32 %v596, %v708
        %710 = vmatmul.f32.gmra.mxu0 %v373
        %v711 = vpop.f32.mrf.mxu0
        %v712 = vadd.f32 %v599, %v711
        %713 = vmatmul.f32.gmra.mxu0 %v376
        %v714 = vpop.f32.mrf.mxu0
        %v715 = vadd.f32 %v602, %v714
        %716 = vmatmul.f32.gmra.mxu0 %v379
        %v717 = vpop.f32.mrf.mxu0
        %v718 = vadd.f32 %v605, %v717
        %719 = vmatmul.f32.gmra.mxu0 %v382
        %v720 = vpop.f32.mrf.mxu0
        %v721 = vadd.f32 %v608, %v720
        %722 = vmatmul.f32.gmra.mxu0 %v385
        %v723 = vpop.f32.mrf.mxu0
        %v724 = vadd.f32 %v611, %v723
        %725 = vmatmul.f32.gmra.mxu0 %v388
        %v726 = vpop.f32.mrf.mxu0
        %v727 = vadd.f32 %v614, %v726
        %728 = vmatmul.f32.gmra.mxu0 %v391
        %v729 = vpop.f32.mrf.mxu0
        %v730 = vadd.f32 %v617, %v729
        %731 = vmatmul.f32.gmra.mxu0 %v394
        %v732 = vpop.f32.mrf.mxu0
        %v733 = vadd.f32 %v620, %v732
        %734 = vmatmul.f32.gmra.mxu0 %v397
        %v735 = vpop.f32.mrf.mxu0
        %v736 = vadd.f32 %v623, %v735
        %737 = vmatmul.f32.gmra.mxu0 %v400
        %v738 = vpop.f32.mrf.mxu0
        %v739 = vadd.f32 %v626, %v738
        %740 = vmatmul.f32.gmra.mxu0 %v403
        %v741 = vpop.f32.mrf.mxu0
        %v742 = vadd.f32 %v629, %v741
        %743 = vmatmul.f32.gmra.mxu0 %v406
        %v744 = vpop.f32.mrf.mxu0
        %v745 = vadd.f32 %v632, %v744
        %746 = vmatmul.f32.gmra.mxu0 %v409
        %v747 = vpop.f32.mrf.mxu0
        %v748 = vadd.f32 %v635, %v747
        %749 = vmatmul.f32.gmra.mxu0 %v412
        %v750 = vpop.f32.mrf.mxu0
        %v751 = vadd.f32 %v638, %v750
        %752 = vmatmul.f32.gmra.mxu0 %v415
        %v753 = vpop.f32.mrf.mxu0
        %v754 = vadd.f32 %v641, %v753
        %755 = vmatmul.f32.gmra.mxu0 %v418
        %v756 = vpop.f32.mrf.mxu0
        %v757 = vadd.f32 %v644, %v756
        %758 = vmatmul.f32.gmra.mxu0 %v421
        %v759 = vpop.f32.mrf.mxu0
        %v760 = vadd.f32 %v647, %v759
        %761 = vmatmul.f32.gmra.mxu0 %v424
        %v762 = vpop.f32.mrf.mxu0
        %v763 = vadd.f32 %v650, %v762
        %764 = vmatmul.f32.gmra.mxu0 %v427
        %v765 = vpop.f32.mrf.mxu0
        %v766 = vadd.f32 %v653, %v765
        %767 = vmatmul.f32.gmra.mxu0 %v430
        %v768 = vpop.f32.mrf.mxu0
        %v769 = vadd.f32 %v656, %v768
        %770 = vmatmul.f32.gmra.mxu0 %v433
        %v771 = vpop.f32.mrf.mxu0
        %v772 = vadd.f32 %v659, %v771
        %773 = vmatmul.f32.gmra.mxu0 %v436
        %v774 = vpop.f32.mrf.mxu0
        %v775 = vadd.f32 %v662, %v774
        %776 = vmatmul.f32.gmra.mxu0 %v439
        %v777 = vpop.f32.mrf.mxu0
        %v778 = vadd.f32 %v665, %v777
        %779 = vmatmul.f32.gmra.mxu0 %v442
        %v780 = vpop.f32.mrf.mxu0
        %v781 = vadd.f32 %v668, %v780
        %782 = vmatmul.f32.gmra.mxu0 %v445
        %v783 = vpop.f32.mrf.mxu0
        %v784 = vadd.f32 %v671, %v783
        %785 = vmatmul.f32.gmra.mxu0 %v448
        %v786 = vpop.f32.mrf.mxu0
        %v787 = vadd.f32 %v674, %v786
        %788 = vmatmul.f32.gmra.mxu0 %v451
        %v789 = vpop.f32.mrf.mxu0
        %v790 = vadd.f32 %v677, %v789
        %791 = vmatmul.f32.gmra.mxu0 %v454
        %v792 = vpop.f32.mrf.mxu0
        %v793 = vadd.f32 %v680, %v792
        %794 = vdwg.mxu0
        %v795 = vmax.f32 %v700, 0.0
        %v796 = vmax.f32 %v703, 0.0
        %v797 = vmax.f32 %v706, 0.0
        %v798 = vmax.f32 %v709, 0.0
        %v799 = vmax.f32 %v712, 0.0
        %v800 = vmax.f32 %v715, 0.0
        %v801 = vmax.f32 %v718, 0.0
        %v802 = vmax.f32 %v721, 0.0
        %v803 = vmax.f32 %v724, 0.0
        %v804 = vmax.f32 %v727, 0.0
        %v805 = vmax.f32 %v730, 0.0
        %v806 = vmax.f32 %v733, 0.0
        %v807 = vmax.f32 %v736, 0.0
        %v808 = vmax.f32 %v739, 0.0
        %v809 = vmax.f32 %v742, 0.0
        %v810 = vmax.f32 %v745, 0.0
        %v811 = vmax.f32 %v748, 0.0
        %v812 = vmax.f32 %v751, 0.0
        %v813 = vmax.f32 %v754, 0.0
        %v814 = vmax.f32 %v757, 0.0
        %v815 = vmax.f32 %v760, 0.0
        %v816 = vmax.f32 %v763, 0.0
        %v817 = vmax.f32 %v766, 0.0
        %v818 = vmax.f32 %v769, 0.0
        %v819 = vmax.f32 %v772, 0.0
        %v820 = vmax.f32 %v775, 0.0
        %v821 = vmax.f32 %v778, 0.0
        %v822 = vmax.f32 %v781, 0.0
        %v823 = vmax.f32 %v784, 0.0
        %v824 = vmax.f32 %v787, 0.0
        %v825 = vmax.f32 %v790, 0.0
        %v826 = vmax.f32 %v793, 0.0
        %v827 = vld [vmem:[%s3] sm:$0xff]
        %v828 = vld [vmem:[%s3 + $0x8] sm:$0xff]
        %v829 = vld [vmem:[%s3 + $0x10] sm:$0xff]
        %v830 = vld [vmem:[%s3 + $0x18] sm:$0xff]
        %v831 = vld [vmem:[%s3 + $0x20] sm:$0xff]
        %v832 = vld [vmem:[%s3 + $0x28] sm:$0xff]
        %v833 = vld [vmem:[%s3 + $0x30] sm:$0xff]
        %v834 = vld [vmem:[%s3 + $0x38] sm:$0xff]
        %v835 = vld [vmem:[%s3 + $0x40] sm:$0xff]
        %v836 = vld [vmem:[%s3 + $0x48] sm:$0xff]
        %v837 = vld [vmem:[%s3 + $0x50] sm:$0xff]
        %v838 = vld [vmem:[%s3 + $0x58] sm:$0xff]
        %v839 = vld [vmem:[%s3 + $0x60] sm:$0xff]
        %v840 = vld [vmem:[%s3 + $0x68] sm:$0xff]
        %v841 = vld [vmem:[%s3 + $0x70] sm:$0xff]
        %v842 = vld [vmem:[%s3 + $0x78] sm:$0xff]
        %v843 = vld [vmem:[%s4] sm:$0x1]
        %v845 = vperm.slane %v843, 0
        %847 = vmatpush.msra.mxu0 %v842
        %848 = vmatpush.msra.mxu0 %v841
        %849 = vmatpush.msra.mxu0 %v840
        %850 = vmatpush.msra.mxu0 %v839
        %851 = vmatpush.msra.mxu0 %v838
        %852 = vmatpush.msra.mxu0 %v837
        %853 = vmatpush.msra.mxu0 %v836
        %854 = vmatpush.msra.mxu0 %v835
        %855 = vmatpush.msra.mxu0 %v834
        %856 = vmatpush.msra.mxu0 %v833
        %857 = vmatpush.msra.mxu0 %v832
        %858 = vmatpush.msra.mxu0 %v831
        %859 = vmatpush.msra.mxu0 %v830
        %860 = vmatpush.msra.mxu0 %v829
        %861 = vmatpush.msra.mxu0 %v828
        %862 = vmatpush.msra.mxu0 %v827
        %863 = vmatmul.f32.gmra.mxu0 %v795
        %v864 = vpop.f32.mrf.mxu0
        %v865 = vadd.f32 %v845, %v864
        %866 = vmatmul.f32.gmra.mxu0 %v796
        %v867 = vpop.f32.mrf.mxu0
        %v868 = vadd.f32 %v845, %v867
        %869 = vmatmul.f32.gmra.mxu0 %v797
        %v870 = vpop.f32.mrf.mxu0
        %v871 = vadd.f32 %v845, %v870
        %872 = vmatmul.f32.gmra.mxu0 %v798
        %v873 = vpop.f32.mrf.mxu0
        %v874 = vadd.f32 %v845, %v873
        %875 = vmatmul.f32.gmra.mxu0 %v799
        %v876 = vpop.f32.mrf.mxu0
        %v877 = vadd.f32 %v845, %v876
        %878 = vmatmul.f32.gmra.mxu0 %v800
        %v879 = vpop.f32.mrf.mxu0
        %v880 = vadd.f32 %v845, %v879
        %881 = vmatmul.f32.gmra.mxu0 %v801
        %v882 = vpop.f32.mrf.mxu0
        %v883 = vadd.f32 %v845, %v882
        %884 = vmatmul.f32.gmra.mxu0 %v802
        %v885 = vpop.f32.mrf.mxu0
        %v886 = vadd.f32 %v845, %v885
        %887 = vmatmul.f32.gmra.mxu0 %v803
        %v888 = vpop.f32.mrf.mxu0
        %v889 = vadd.f32 %v845, %v888
        %890 = vmatmul.f32.gmra.mxu0 %v804
        %v891 = vpop.f32.mrf.mxu0
        %v892 = vadd.f32 %v845, %v891
        %893 = vmatmul.f32.gmra.mxu0 %v805
        %v894 = vpop.f32.mrf.mxu0
        %v895 = vadd.f32 %v845, %v894
        %896 = vmatmul.f32.gmra.mxu0 %v806
        %v897 = vpop.f32.mrf.mxu0
        %v898 = vadd.f32 %v845, %v897
        %899 = vmatmul.f32.gmra.mxu0 %v807
        %v900 = vpop.f32.mrf.mxu0
        %v901 = vadd.f32 %v845, %v900
        %902 = vmatmul.f32.gmra.mxu0 %v808
        %v903 = vpop.f32.mrf.mxu0
        %v904 = vadd.f32 %v845, %v903
        %905 = vmatmul.f32.gmra.mxu0 %v809
        %v906 = vpop.f32.mrf.mxu0
        %v907 = vadd.f32 %v845, %v906
        %908 = vmatmul.f32.gmra.mxu0 %v810
        %v909 = vpop.f32.mrf.mxu0
        %v910 = vadd.f32 %v845, %v909
        %911 = vmatmul.f32.gmra.mxu0 %v811
        %v912 = vpop.f32.mrf.mxu0
        %v913 = vadd.f32 %v845, %v912
        %914 = vmatmul.f32.gmra.mxu0 %v812
        %v915 = vpop.f32.mrf.mxu0
        %v916 = vadd.f32 %v845, %v915
        %917 = vmatmul.f32.gmra.mxu0 %v813
        %v918 = vpop.f32.mrf.mxu0
        %v919 = vadd.f32 %v845, %v918
        %920 = vmatmul.f32.gmra.mxu0 %v814
        %v921 = vpop.f32.mrf.mxu0
        %v922 = vadd.f32 %v845, %v921
        %923 = vmatmul.f32.gmra.mxu0 %v815
        %v924 = vpop.f32.mrf.mxu0
        %v925 = vadd.f32 %v845, %v924
        %926 = vmatmul.f32.gmra.mxu0 %v816
        %v927 = vpop.f32.mrf.mxu0
        %v928 = vadd.f32 %v845, %v927
        %929 = vmatmul.f32.gmra.mxu0 %v817
        %v930 = vpop.f32.mrf.mxu0
        %v931 = vadd.f32 %v845, %v930
        %932 = vmatmul.f32.gmra.mxu0 %v818
        %v933 = vpop.f32.mrf.mxu0
        %v934 = vadd.f32 %v845, %v933
        %935 = vmatmul.f32.gmra.mxu0 %v819
        %v936 = vpop.f32.mrf.mxu0
        %v937 = vadd.f32 %v845, %v936
        %938 = vmatmul.f32.gmra.mxu0 %v820
        %v939 = vpop.f32.mrf.mxu0
        %v940 = vadd.f32 %v845, %v939
        %941 = vmatmul.f32.gmra.mxu0 %v821
        %v942 = vpop.f32.mrf.mxu0
        %v943 = vadd.f32 %v845, %v942
        %944 = vmatmul.f32.gmra.mxu0 %v822
        %v945 = vpop.f32.mrf.mxu0
        %v946 = vadd.f32 %v845, %v945
        %947 = vmatmul.f32.gmra.mxu0 %v823
        %v948 = vpop.f32.mrf.mxu0
        %v949 = vadd.f32 %v845, %v948
        %950 = vmatmul.f32.gmra.mxu0 %v824
        %v951 = vpop.f32.mrf.mxu0
        %v952 = vadd.f32 %v845, %v951
        %953 = vmatmul.f32.gmra.mxu0 %v825
        %v954 = vpop.f32.mrf.mxu0
        %v955 = vadd.f32 %v845, %v954
        %956 = vmatmul.f32.gmra.mxu0 %v826
        %v957 = vpop.f32.mrf.mxu0
        %v958 = vadd.f32 %v845, %v957
        %959 = vdwg.mxu0
        %960 = vst [vmem:[%s217] sm:$0xff] %v865
        %961 = vst [vmem:[%s217 + $0x8] sm:$0xff] %v868
        %962 = vst [vmem:[%s217 + $0x10] sm:$0xff] %v871
        %963 = vst [vmem:[%s217 + $0x18] sm:$0xff] %v874
        %964 = vst [vmem:[%s217 + $0x20] sm:$0xff] %v877
        %965 = vst [vmem:[%s217 + $0x28] sm:$0xff] %v880
        %966 = vst [vmem:[%s217 + $0x30] sm:$0xff] %v883
        %967 = vst [vmem:[%s217 + $0x38] sm:$0xff] %v886
        %968 = vst [vmem:[%s217 + $0x40] sm:$0xff] %v889
        %969 = vst [vmem:[%s217 + $0x48] sm:$0xff] %v892
        %970 = vst [vmem:[%s217 + $0x50] sm:$0xff] %v895
        %971 = vst [vmem:[%s217 + $0x58] sm:$0xff] %v898
        %972 = vst [vmem:[%s217 + $0x60] sm:$0xff] %v901
        %973 = vst [vmem:[%s217 + $0x68] sm:$0xff] %v904
        %974 = vst [vmem:[%s217 + $0x70] sm:$0xff] %v907
        %975 = vst [vmem:[%s217 + $0x78] sm:$0xff] %v910
        %976 = vst [vmem:[%s217 + $0x80] sm:$0xff] %v913
        %977 = vst [vmem:[%s217 + $0x88] sm:$0xff] %v916
        %978 = vst [vmem:[%s217 + $0x90] sm:$0xff] %v919
        %979 = vst [vmem:[%s217 + $0x98] sm:$0xff] %v922
        %980 = vst [vmem:[%s217 + $0xa0] sm:$0xff] %v925
        %981 = vst [vmem:[%s217 + $0xa8] sm:$0xff] %v928
        %982 = vst [vmem:[%s217 + $0xb0] sm:$0xff] %v931
        %983 = vst [vmem:[%s217 + $0xb8] sm:$0xff] %v934
        %984 = vst [vmem:[%s217 + $0xc0] sm:$0xff] %v937
        %985 = vst [vmem:[%s217 + $0xc8] sm:$0xff] %v940
        %986 = vst [vmem:[%s217 + $0xd0] sm:$0xff] %v943
        %987 = vst [vmem:[%s217 + $0xd8] sm:$0xff] %v946
        %988 = vst [vmem:[%s217 + $0xe0] sm:$0xff] %v949
        %989 = vst [vmem:[%s217 + $0xe8] sm:$0xff] %v952
        %990 = vst [vmem:[%s217 + $0xf0] sm:$0xff] %v955
        %991 = vst [vmem:[%s217 + $0xf8] sm:$0xff] %v958
        %s992 = sand.u32 %s137, 1
        %s993 = scalar_lea.sflag [#allocation3], %s992
        %s994 = sand.u32 %s137, 1
        %s995 = smul.addr %s994, 256
        %s996 = scalar_lea.vmem [#allocation2], %s995
        // Predicated region
        $region41: #{tpu_custom_call.1} parent=39 // pred_check
          %p997 = pneg %p147
        $region42: #{tpu_custom_call.1} parent=39 // pred_check_branch
          %999 = sbr.rel (%p997) target = $region44
        $region43: #{tpu_custom_call.1} parent=39 // pred_region
          %1001 = vsyncadd %s993, 0
          %s1002 = smul.addr %s19, 32
          %s1003 = smul.addr %s1002, 8
          %s1004 = scalar_lea.hbm %s5, %s1003
          %s1005 = sshll.u32 %s996, 4
          %s1006 = int_to_ptr.vmem [resolvable:$true] %s1005
          %s1007 = sshll.u32 %s1004, 4
          %s1008 = int_to_ptr.hbm [resolvable:$true] %s1007
          %1013 = dma.vmem_to_hbm [thread:$0]  %s1006, 4096, %s1008, %s993, 128, 128, 8
        $region44: #{tpu_custom_call.1} parent=39 // pred_fallthru
          _
      $region40: #{tpu_custom_call.1} parent=5 // pred_fallthru
        _
      %p1014 = scmp.le.s32.totalorder 2, %s14
      // Predicated region
      $region45: #{tpu_custom_call.1} parent=5 // pred_check
        %p1015 = pneg %p1014
      $region46: #{tpu_custom_call.1} parent=5 // pred_check_branch
        %1017 = sbr.rel (%p1015) target = $region48
      $region47: #{tpu_custom_call.1} parent=5 // pred_region
        %s1018 = ssub.s32 %s14, 2
        // Predicated region
        $region49: #{tpu_custom_call.1} parent=47 // pred_check
          %p1019 = pneg %p153
        $region50: #{tpu_custom_call.1} parent=47 // pred_check_branch
          %1021 = sbr.rel (%p1019) target = $region52
        $region51: #{tpu_custom_call.1} parent=47 // pred_region
          %s1022 = sand.u32 %s138, 1
          %s1023 = scalar_lea.sflag [#allocation3], %s1022
          %s1024 = sand.u32 %s138, 1
          %s1025 = smul.addr %s1024, 256
          %s1026 = scalar_lea.vmem [#allocation2], %s1025
          %1028 = dma.done %s1023, 4096
        $region52: #{tpu_custom_call.1} parent=47 // pred_fallthru
          _
      $region48: #{tpu_custom_call.1} parent=5 // pred_fallthru
        _
    $region6: #{tpu_custom_call.1} parent=1 // loop_footer
      %s18 = sadd.s32 1, %s14
    $region7: #{tpu_custom_call.1} parent=1 // loop_footer_branch
      %13 = sbr.rel target = $region3
    $region8: #{tpu_custom_call.1} parent=1 // loop_exit
      _
    %1029 = vsyncpa [#allocation3], 1
    %s1030 = scalar_lea.sflag [#allocation3], 1
    %1031 = vsyncpa %s1030, 1

</llo_original>
